<compile_context>
chip_gen: v7x
topology: tpu7x:2x2x1
jax: 0.10.0
libtpu: 0.0.40
codegen_flags: <defaults>
</compile_context>

<pallas_src>
import math

import jax
import jax.numpy as jnp
from jax.experimental import pallas as pl
from jax.experimental.pallas import tpu as pltpu

HIDDEN1 = 500
HIDDEN1_PAD = 512   # 500 -> 512: clean 4x128 (v5e) / 2x256 (v6e,v7x) MXU passes
HIDDEN2 = 128
LANE = 128


def _round_up(x, m):
    return (x + m - 1) // m * m


def _default_epilogue_dtype():
    """bf16 bias-add/relu on bf16-native VPUs (v6e/v7x); f32 on v5e and older."""
    try:
        kind = jax.devices()[0].device_kind.lower()
    except Exception:
        return jnp.float32
    if ("v6" in kind) or ("v7" in kind) or ("7x" in kind):
        return jnp.bfloat16
    return jnp.float32


# ----------------------------------------------------------------------------
# Kernel
# ----------------------------------------------------------------------------
def actor_kernel(obs_ref, w1_ref, b1_ref, w2_ref, b2_ref, w3_ref, b3_ref,
                 out_ref):
    mm_dtype = w1_ref.dtype          # bf16 matmul inputs (f32 accumulation)
    ep_dtype = b1_ref.dtype          # epilogue dtype: bf16 on v6e/v7x, f32 on v5e

    # In-kernel f32 -> bf16 cast of the observation tile (free in spare VPU slots).
    x = obs_ref[...].astype(mm_dtype)                               # [tb, D]

    h1 = jnp.dot(x, w1_ref[...], preferred_element_type=jnp.float32)
    h1 = jnp.maximum(h1.astype(ep_dtype) + b1_ref[...], 0)          # [tb, 512]

    h2 = jnp.dot(h1.astype(mm_dtype), w2_ref[...],
                 preferred_element_type=jnp.float32)
    h2 = jnp.maximum(h2.astype(ep_dtype) + b2_ref[...], 0)          # [tb, 128]

    h3 = jnp.dot(h2.astype(mm_dtype), w3_ref[...],
                 preferred_element_type=jnp.float32)
    # tanh kept in f32 (EUP); result stored bf16 to halve output writeback.
    out_ref[...] = jnp.tanh(h3 + b3_ref[...]).astype(out_ref.dtype)  # [tb, A_pad]


# ----------------------------------------------------------------------------
# Wrapper
# ----------------------------------------------------------------------------
def _pick_batch_tiling(B, batch_tile):
    """Even batch split: pad waste < one tile; >= 2 tiles for B >= 256 (v7x 2 TCs)."""
    if B >= 2048:
        batch_tile = max(batch_tile, 512)
    n_tiles = max(1, -(-B // batch_tile))
    if B >= 256 and n_tiles < 2:
        n_tiles = 2
    tb = _round_up(-(-B // n_tiles), 8)
    B_pad = _round_up(B, tb)
    return tb, B_pad


def actor_forward(obs, kparams, *, batch_tile=256):
    """Fused Actor forward pass.

    obs:     [B, dim_observation] float32
    kparams: dict from prepare_actor_params (padded, bf16 weights)
    Returns: [B, dim_action] float32
    """
    w1, b1 = kparams["w1"], kparams["b1"]
    w2, b2 = kparams["w2"], kparams["b2"]
    w3, b3 = kparams["w3"], kparams["b3"]
    dim_action = kparams["dim_action"]

    B, D = obs.shape
    A_pad = w3.shape[1]

    tb, B_pad = _pick_batch_tiling(B, batch_tile)
    if B_pad != B:
        obs = jnp.pad(obs, ((0, B_pad - B), (0, 0)))
    # NOTE: obs stays f32 here; the bf16 cast happens inside the kernel.

    grid = (B_pad // tb,)

    in_specs = [
        pl.BlockSpec((tb, D), lambda i: (i, 0)),          # obs tile (f32)
        pl.BlockSpec(w1.shape, lambda i: (0, 0)),         # W1 (VMEM-resident)
        pl.BlockSpec(b1.shape, lambda i: (0, 0)),         # b1
        pl.BlockSpec(w2.shape, lambda i: (0, 0)),         # W2
        pl.BlockSpec(b2.shape, lambda i: (0, 0)),         # b2
        pl.BlockSpec(w3.shape, lambda i: (0, 0)),         # W3
        pl.BlockSpec(b3.shape, lambda i: (0, 0)),         # b3
    ]
    out_spec = pl.BlockSpec((tb, A_pad), lambda i: (i, 0))

    flops = 2 * B_pad * (D * HIDDEN1_PAD + HIDDEN1_PAD * HIDDEN2 + HIDDEN2 * A_pad)
    bytes_accessed = (
        B_pad * D * 4
        + (w1.size + w2.size + w3.size) * w1.dtype.itemsize
        + (b1.size * b1.dtype.itemsize + b2.size * b2.dtype.itemsize
           + b3.size * b3.dtype.itemsize)
        + B_pad * A_pad * 2
    )
    cost = pl.CostEstimate(flops=flops, transcendentals=B_pad * A_pad,
                           bytes_accessed=bytes_accessed)

    out_padded = pl.pallas_call(
        actor_kernel,
        out_shape=jax.ShapeDtypeStruct((B_pad, A_pad), jnp.bfloat16),
        grid_spec=pl.GridSpec(
            grid=grid,
            in_specs=in_specs,
            out_specs=out_spec,
        ),
        compiler_params=pltpu.CompilerParams(
            dimension_semantics=("parallel",)),
        cost_estimate=cost,
    )(obs, w1, b1, w2, b2, w3, b3)

    return out_padded[:B, :dim_action].astype(jnp.float32)


# ----------------------------------------------------------------------------
# Parameter setup
# ----------------------------------------------------------------------------
def init_actor_params(key, dim_observation, dim_action):
    """f32 master params mirroring nn.Linear default init, stored [in, out]."""
    def linear(key, fan_in, fan_out):
        kw, kb = jax.random.split(key)
        bound = 1.0 / math.sqrt(fan_in)
        w = jax.random.uniform(kw, (fan_in, fan_out), jnp.float32,
                               minval=-bound, maxval=bound)
        b = jax.random.uniform(kb, (1, fan_out), jnp.float32,
                               minval=-bound, maxval=bound)
        return w, b

    k1, k2, k3 = jax.random.split(key, 3)
    w1, b1 = linear(k1, dim_observation, HIDDEN1)
    w2, b2 = linear(k2, HIDDEN1, HIDDEN2)
    w3, b3 = linear(k3, HIDDEN2, dim_action)
    return {"w1": w1, "b1": b1, "w2": w2, "b2": b2, "w3": w3, "b3": b3}


def prepare_actor_params(params_f32, dim_action, matmul_dtype=jnp.bfloat16,
                         epilogue_dtype=None):
    """Pad (500->512 hidden, dim_action->128 lanes) and cast weights for the kernel.

    Padded W1 columns / b1 entries / W2 rows / W3 columns / b3 entries are
    exactly zero, so results are identical through the relu, and the padded
    output columns are tanh(0)=0 (sliced off by the wrapper).
    b1/b2 are stored in the epilogue dtype (bf16 on v6e/v7x, f32 on v5e); b3
    stays f32 so the final tanh epilogue runs in f32.
    """
    if epilogue_dtype is None:
        epilogue_dtype = _default_epilogue_dtype()

    D = params_f32["w1"].shape[0]
    A_pad = _round_up(max(dim_action, 1), LANE)

    w1 = jnp.zeros((D, HIDDEN1_PAD), jnp.float32).at[:, :HIDDEN1].set(
        params_f32["w1"])
    b1 = jnp.zeros((1, HIDDEN1_PAD), jnp.float32).at[:, :HIDDEN1].set(
        params_f32["b1"])
    w2 = jnp.zeros((HIDDEN1_PAD, HIDDEN2), jnp.float32).at[:HIDDEN1, :].set(
        params_f32["w2"])
    b2 = params_f32["b2"]
    w3 = jnp.zeros((HIDDEN2, A_pad), jnp.float32).at[:, :dim_action].set(
        params_f32["w3"])
    b3 = jnp.zeros((1, A_pad), jnp.float32).at[:, :dim_action].set(
        params_f32["b3"])

    return {
        "w1": w1.astype(matmul_dtype), "b1": b1.astype(epilogue_dtype),
        "w2": w2.astype(matmul_dtype), "b2": b2.astype(epilogue_dtype),
        "w3": w3.astype(matmul_dtype), "b3": b3,
        "dim_action": dim_action,
    }


def actor_reference(obs, params_f32):
    """Pure-JAX f32 reference of the PyTorch forward pass."""
    h = jnp.maximum(obs @ params_f32["w1"] + params_f32["b1"], 0.0)
    h = jnp.maximum(h @ params_f32["w2"] + params_f32["b2"], 0.0)
    return jnp.tanh(h @ params_f32["w3"] + params_f32["b3"])


# ----------------------------------------------------------------------------
# Demo / correctness check
# ----------------------------------------------------------------------------
if __name__ == "__main__":
    dim_observation = 32
    dim_action = 8

    key = jax.random.PRNGKey(0)
    k_params, k_obs_small, k_obs_tiled = jax.random.split(key, 3)

    params_f32 = init_actor_params(k_params, dim_observation, dim_action)
    kparams = prepare_actor_params(params_f32, dim_action)

    # Small-batch path (single tile, tb=8).
    obs = jax.random.normal(k_obs_small, (8, dim_observation), jnp.float32)
    out = jax.block_until_ready(actor_forward(obs, kparams))
    ref = actor_reference(obs, params_f32)
    assert out.shape == (8, dim_action)
    assert jnp.allclose(out, ref, atol=3e-2, rtol=3e-2), "small-batch mismatch"

    # Multi-tile grid path (600 rows -> 3 even tiles of 200, zero pad waste).
    obs2 = jax.random.normal(k_obs_tiled, (600, dim_observation), jnp.float32)
    out2 = jax.block_until_ready(actor_forward(obs2, kparams))
    ref2 = actor_reference(obs2, params_f32)
    assert out2.shape == (600, dim_action)
    assert jnp.allclose(out2, ref2, atol=3e-2, rtol=3e-2), "tiled-batch mismatch"

    print("KERNEL_OK")
</pallas_src>

<mosaic_0001>
module attributes {stable_mosaic.version = 11 : i64} {
  func.func @actor_kernel(%arg0: i32, %arg1: memref<8x32xf32, #tpu.memory_space<vmem>>, %arg2: memref<32x512xbf16, #tpu.memory_space<vmem>>, %arg3: memref<1x512xf32, #tpu.memory_space<vmem>>, %arg4: memref<512x128xbf16, #tpu.memory_space<vmem>>, %arg5: memref<1x128xf32, #tpu.memory_space<vmem>>, %arg6: memref<128x128xbf16, #tpu.memory_space<vmem>>, %arg7: memref<1x128xf32, #tpu.memory_space<vmem>>, %arg8: memref<8x128xbf16, #tpu.memory_space<vmem>>) attributes {dimension_semantics = [#tpu.dimension_semantics<parallel>], iteration_bounds = array<i64: 1>, scalar_prefetch = 0 : i64, scratch_operands = 0 : i64, tpu.core_type = #tpu.core_type<tc>, window_params = [{transform_indices = @transform_0, window_bounds = array<i64: 8, 32>}, {pipeline_mode = #tpu.pipeline_mode<synchronous>, transform_indices = @transform_1, window_bounds = array<i64: 32, 512>}, {pipeline_mode = #tpu.pipeline_mode<synchronous>, transform_indices = @transform_2, window_bounds = array<i64: 1, 512>}, {pipeline_mode = #tpu.pipeline_mode<synchronous>, transform_indices = @transform_3, window_bounds = array<i64: 512, 128>}, {pipeline_mode = #tpu.pipeline_mode<synchronous>, transform_indices = @transform_4, window_bounds = array<i64: 1, 128>}, {pipeline_mode = #tpu.pipeline_mode<synchronous>, transform_indices = @transform_5, window_bounds = array<i64: 128, 128>}, {pipeline_mode = #tpu.pipeline_mode<synchronous>, transform_indices = @transform_6, window_bounds = array<i64: 1, 128>}, {transform_indices = @transform_7, window_bounds = array<i64: 8, 128>}]} {
    %c0 = arith.constant 0 : index
    %c0_0 = arith.constant 0 : index
    %0 = vector.load %arg1[%c0, %c0_0] : memref<8x32xf32, #tpu.memory_space<vmem>>, vector<8x32xf32>
    %1 = arith.truncf %0 : vector<8x32xf32> to vector<8x32xbf16>
    %c0_1 = arith.constant 0 : index
    %c0_2 = arith.constant 0 : index
    %2 = vector.load %arg2[%c0_1, %c0_2] : memref<32x512xbf16, #tpu.memory_space<vmem>>, vector<32x512xbf16>
    %cst = arith.constant dense<0.000000e+00> : vector<8x512xf32>
    %3 = tpu.matmul %1, %2, %cst {dimension_numbers = #tpu.dot_dimension_numbers<[1], [0], [0], [1], [0, 0, 1, 1], [], []>} : vector<8x32xbf16>, vector<32x512xbf16>, vector<8x512xf32> -> vector<8x512xf32>
    %c0_3 = arith.constant 0 : index
    %c0_4 = arith.constant 0 : index
    %4 = vector.load %arg3[%c0_3, %c0_4] : memref<1x512xf32, #tpu.memory_space<vmem>>, vector<1x512xf32>
    %5 = vector.broadcast %4 : vector<1x512xf32> to vector<8x512xf32>
    %6 = arith.addf %3, %5 : vector<8x512xf32>
    %cst_5 = arith.constant 0.000000e+00 : f32
    %7 = vector.broadcast %cst_5 : f32 to vector<8x512xf32>
    %8 = arith.maximumf %6, %7 : vector<8x512xf32>
    %9 = arith.truncf %8 : vector<8x512xf32> to vector<8x512xbf16>
    %c0_6 = arith.constant 0 : index
    %c0_7 = arith.constant 0 : index
    %10 = vector.load %arg4[%c0_6, %c0_7] : memref<512x128xbf16, #tpu.memory_space<vmem>>, vector<512x128xbf16>
    %cst_8 = arith.constant dense<0.000000e+00> : vector<8x128xf32>
    %11 = tpu.matmul %9, %10, %cst_8 {dimension_numbers = #tpu.dot_dimension_numbers<[1], [0], [0], [1], [0, 0, 1, 1], [], []>} : vector<8x512xbf16>, vector<512x128xbf16>, vector<8x128xf32> -> vector<8x128xf32>
    %c0_9 = arith.constant 0 : index
    %c0_10 = arith.constant 0 : index
    %12 = vector.load %arg5[%c0_9, %c0_10] : memref<1x128xf32, #tpu.memory_space<vmem>>, vector<1x128xf32>
    %13 = vector.broadcast %12 : vector<1x128xf32> to vector<8x128xf32>
    %14 = arith.addf %11, %13 : vector<8x128xf32>
    %cst_11 = arith.constant 0.000000e+00 : f32
    %15 = vector.broadcast %cst_11 : f32 to vector<8x128xf32>
    %16 = arith.maximumf %14, %15 : vector<8x128xf32>
    %17 = arith.truncf %16 : vector<8x128xf32> to vector<8x128xbf16>
    %c0_12 = arith.constant 0 : index
    %c0_13 = arith.constant 0 : index
    %18 = vector.load %arg6[%c0_12, %c0_13] : memref<128x128xbf16, #tpu.memory_space<vmem>>, vector<128x128xbf16>
    %cst_14 = arith.constant dense<0.000000e+00> : vector<8x128xf32>
    %19 = tpu.matmul %17, %18, %cst_14 {dimension_numbers = #tpu.dot_dimension_numbers<[1], [0], [0], [1], [0, 0, 1, 1], [], []>} : vector<8x128xbf16>, vector<128x128xbf16>, vector<8x128xf32> -> vector<8x128xf32>
    %c0_15 = arith.constant 0 : index
    %c0_16 = arith.constant 0 : index
    %20 = vector.load %arg7[%c0_15, %c0_16] : memref<1x128xf32, #tpu.memory_space<vmem>>, vector<1x128xf32>
    %21 = vector.broadcast %20 : vector<1x128xf32> to vector<8x128xf32>
    %22 = arith.addf %19, %21 : vector<8x128xf32>
    %23 = math.tanh %22 : vector<8x128xf32>
    %24 = arith.truncf %23 : vector<8x128xf32> to vector<8x128xbf16>
    %c0_17 = arith.constant 0 : index
    %c0_18 = arith.constant 0 : index
    %25 = vector.load %arg8[%c0_17, %c0_18] : memref<8x128xbf16, #tpu.memory_space<vmem>>, vector<8x128xbf16>
    tpu.vector_store %arg8[%c0_17, %c0_18], %24 {strides = array<i32>} : memref<8x128xbf16, #tpu.memory_space<vmem>>, vector<8x128xbf16>,
    return
  }
  func.func @transform_0(%arg0: i32) -> (i32, i32) {
    %c0_i32 = arith.constant 0 : i32
    %c0_i32_0 = arith.constant 0 : i32
    return %arg0, %c0_i32 : i32, i32
  }
  func.func @transform_1(%arg0: i32) -> (i32, i32) {
    %c0_i32 = arith.constant 0 : i32
    %c0_i32_0 = arith.constant 0 : i32
    %c0_i32_1 = arith.constant 0 : i32
    return %c0_i32, %c0_i32_0 : i32, i32
  }
  func.func @transform_2(%arg0: i32) -> (i32, i32) {
    %c0_i32 = arith.constant 0 : i32
    %c0_i32_0 = arith.constant 0 : i32
    %c0_i32_1 = arith.constant 0 : i32
    return %c0_i32, %c0_i32_0 : i32, i32
  }
  func.func @transform_3(%arg0: i32) -> (i32, i32) {
    %c0_i32 = arith.constant 0 : i32
    %c0_i32_0 = arith.constant 0 : i32
    %c0_i32_1 = arith.constant 0 : i32
    return %c0_i32, %c0_i32_0 : i32, i32
  }
  func.func @transform_4(%arg0: i32) -> (i32, i32) {
    %c0_i32 = arith.constant 0 : i32
    %c0_i32_0 = arith.constant 0 : i32
    %c0_i32_1 = arith.constant 0 : i32
    return %c0_i32, %c0_i32_0 : i32, i32
  }
  func.func @transform_5(%arg0: i32) -> (i32, i32) {
    %c0_i32 = arith.constant 0 : i32
    %c0_i32_0 = arith.constant 0 : i32
    %c0_i32_1 = arith.constant 0 : i32
    return %c0_i32, %c0_i32_0 : i32, i32
  }
  func.func @transform_6(%arg0: i32) -> (i32, i32) {
    %c0_i32 = arith.constant 0 : i32
    %c0_i32_0 = arith.constant 0 : i32
    %c0_i32_1 = arith.constant 0 : i32
    return %c0_i32, %c0_i32_0 : i32, i32
  }
  func.func @transform_7(%arg0: i32) -> (i32, i32) {
    %c0_i32 = arith.constant 0 : i32
    %c0_i32_0 = arith.constant 0 : i32
    return %arg0, %c0_i32 : i32, i32
  }
}

</mosaic_0001>

<llo_original>
// kernel: tpu_custom_call.1
$region0: #{tpu_custom_call.1}
  #allocation0 [shape = 'u32[]', space=smem, size = 0x4, offset = 0x4, fixed_abs, tag = 'smem constant byte address 0x4 - core index']
  #allocation1 [shape = 'u32[144,128]{1,0:T(1,128)}', space=vmem, size = 0x12000, scoped, tag = 'internal scratch']
  %s0 = inlined_call_operand.hbm [shape: f32[8,32], index: 0, kind: input, shape index: {}]
  %s1 = inlined_call_operand.hbm [shape: bf16[32,512], index: 1, kind: input, shape index: {}]
  %s2 = inlined_call_operand.vmem [shape: f32[1,512], index: 2, kind: input, shape index: {}]
  %s3 = inlined_call_operand.hbm [shape: bf16[512,128], index: 3, kind: input, shape index: {}]
  %s4 = inlined_call_operand.vmem [shape: f32[1,128], index: 4, kind: input, shape index: {}]
  %s5 = inlined_call_operand.hbm [shape: bf16[128,128], index: 5, kind: input, shape index: {}]
  %s6 = inlined_call_operand.vmem [shape: f32[1,128], index: 6, kind: input, shape index: {}]
  %s7 = inlined_call_operand.hbm [shape: bf16[8,128], index: 7, kind: output, shape index: {}]
  %s8 = sld [smem:[#allocation0]]
  $region54: #{tpu_custom_call.1} parent=0
    _
  %s10 = ssub.s32 1, %s8
  %s11 = scalar_select 0, %s10, %s8
  $region1: #{tpu_custom_call.1} parent=0
    #allocation2 [shape = 'u8[4096]{0}', space=vmem, size = 0x1000, scoped, tag = 'input window, operand 0, single buffered']
    #allocation3 [shape = 's32[1]{0}', space=sflag, size = 0x4, scoped, tag = 'scoped memory for tpu_custom_call.1']
    #allocation4 [shape = 's32[1]{0}', space=sflag, size = 0x4, scoped, tag = 'scoped memory for tpu_custom_call.1']
    #allocation5 [shape = 'u8[32768]{0}', space=vmem, size = 0x8000, scoped, tag = 'input window, operand 1, single buffered']
    #allocation6 [shape = 's32[1]{0}', space=sflag, size = 0x4, scoped, tag = 'scoped memory for tpu_custom_call.1']
    #allocation7 [shape = 'u8[131072]{0}', space=vmem, size = 0x20000, scoped, tag = 'input window, operand 3, single buffered']
    #allocation8 [shape = 'u8[32768]{0}', space=vmem, size = 0x8000, scoped, tag = 'input window, operand 5, single buffered']
    #allocation9 [shape = 's32[1]{0}', space=sflag, size = 0x4, scoped, tag = 'scoped memory for tpu_custom_call.1']
    #allocation10 [shape = 'u8[2048]{0}', space=vmem, size = 0x800, scoped, tag = 'output window, operand 0, single buffered']
    %12 = vsyncpa [#allocation3], 0
    %13 = vsyncpa [#allocation6], 0
    %14 = vsyncpa [#allocation9], 0
    %15 = vsyncpa [#allocation4], 0
    // Predicated region
    $region2: #{tpu_custom_call.1} parent=1 // pred_check
      _
    $region3: #{tpu_custom_call.1} parent=1 // pred_check_branch
      %17 = sbr.rel (0) target = $region5
    $region4: #{tpu_custom_call.1} parent=1 // pred_region
      %s19 = ssub.s32 128, 128
      %20 = vsyncadd [#allocation3], %s19
      %s22 = sshll.u32 [#allocation2], 4
      %s23 = int_to_ptr.vmem [resolvable:$true] %s22
      %25 = dma.hbm_to_vmem [thread:$0]  %s0, 128, %s23, [#allocation3]
    $region5: #{tpu_custom_call.1} parent=1 // pred_fallthru
      _
    // Predicated region
    $region6: #{tpu_custom_call.1} parent=1 // pred_check
      _
    $region7: #{tpu_custom_call.1} parent=1 // pred_check_branch
      %27 = sbr.rel (0) target = $region9
    $region8: #{tpu_custom_call.1} parent=1 // pred_region
      %s29 = ssub.s32 1024, 1024
      %30 = vsyncadd [#allocation6], %s29
      %s31 = sshll.u32 [#allocation5], 4
      %s32 = int_to_ptr.vmem [resolvable:$true] %s31
      %37 = dma.hbm_to_vmem [thread:$0]  %s1, 1024, %s32, [#allocation6], 256, 256, 16
    $region9: #{tpu_custom_call.1} parent=1 // pred_fallthru
      _
    // Predicated region
    $region10: #{tpu_custom_call.1} parent=1 // pred_check
      _
    $region11: #{tpu_custom_call.1} parent=1 // pred_check_branch
      %39 = sbr.rel (0) target = $region13
    $region12: #{tpu_custom_call.1} parent=1 // pred_region
      _
    $region13: #{tpu_custom_call.1} parent=1 // pred_fallthru
      _
    // Predicated region
    $region14: #{tpu_custom_call.1} parent=1 // pred_check
      _
    $region15: #{tpu_custom_call.1} parent=1 // pred_check_branch
      %41 = sbr.rel (0) target = $region17
    $region16: #{tpu_custom_call.1} parent=1 // pred_region
      %s43 = ssub.s32 4096, 4096
      %44 = vsyncadd [#allocation6], %s43
      %s45 = sshll.u32 [#allocation7], 4
      %s46 = int_to_ptr.vmem [resolvable:$true] %s45
      %51 = dma.hbm_to_vmem [thread:$0]  %s3, 4096, %s46, [#allocation6], 64, 64, 4
    $region17: #{tpu_custom_call.1} parent=1 // pred_fallthru
      _
    // Predicated region
    $region18: #{tpu_custom_call.1} parent=1 // pred_check
      _
    $region19: #{tpu_custom_call.1} parent=1 // pred_check_branch
      %53 = sbr.rel (0) target = $region21
    $region20: #{tpu_custom_call.1} parent=1 // pred_region
      _
    $region21: #{tpu_custom_call.1} parent=1 // pred_fallthru
      _
    // Predicated region
    $region22: #{tpu_custom_call.1} parent=1 // pred_check
      _
    $region23: #{tpu_custom_call.1} parent=1 // pred_check_branch
      %55 = sbr.rel (0) target = $region25
    $region24: #{tpu_custom_call.1} parent=1 // pred_region
      %s57 = ssub.s32 1024, 1024
      %58 = vsyncadd [#allocation9], %s57
      %s59 = sshll.u32 [#allocation8], 4
      %s60 = int_to_ptr.vmem [resolvable:$true] %s59
      %65 = dma.hbm_to_vmem [thread:$0]  %s5, 1024, %s60, [#allocation9], 64, 64, 4
    $region25: #{tpu_custom_call.1} parent=1 // pred_fallthru
      _
    // Predicated region
    $region26: #{tpu_custom_call.1} parent=1 // pred_check
      _
    $region27: #{tpu_custom_call.1} parent=1 // pred_check_branch
      %67 = sbr.rel (0) target = $region29
    $region28: #{tpu_custom_call.1} parent=1 // pred_region
      _
    $region29: #{tpu_custom_call.1} parent=1 // pred_fallthru
      _
    // Predicated region
    $region30: #{tpu_custom_call.1} parent=1 // pred_check
      _
    $region31: #{tpu_custom_call.1} parent=1 // pred_check_branch
      %69 = sbr.rel (0) target = $region33
    $region32: #{tpu_custom_call.1} parent=1 // pred_region
      %70 = dma.done [#allocation3], 128
    $region33: #{tpu_custom_call.1} parent=1 // pred_fallthru
      _
    // Predicated region
    $region34: #{tpu_custom_call.1} parent=1 // pred_check
      _
    $region35: #{tpu_custom_call.1} parent=1 // pred_check_branch
      %72 = sbr.rel (0) target = $region37
    $region36: #{tpu_custom_call.1} parent=1 // pred_region
      %73 = dma.done [#allocation6], 1024
    $region37: #{tpu_custom_call.1} parent=1 // pred_fallthru
      _
    // Predicated region
    $region38: #{tpu_custom_call.1} parent=1 // pred_check
      _
    $region39: #{tpu_custom_call.1} parent=1 // pred_check_branch
      %75 = sbr.rel (0) target = $region41
    $region40: #{tpu_custom_call.1} parent=1 // pred_region
      %76 = dma.done [#allocation6], 4096
    $region41: #{tpu_custom_call.1} parent=1 // pred_fallthru
      _
    // Predicated region
    $region42: #{tpu_custom_call.1} parent=1 // pred_check
      _
    $region43: #{tpu_custom_call.1} parent=1 // pred_check_branch
      %78 = sbr.rel (0) target = $region45
    $region44: #{tpu_custom_call.1} parent=1 // pred_region
      %79 = dma.done [#allocation9], 1024
    $region45: #{tpu_custom_call.1} parent=1 // pred_fallthru
      _
    %v81 = vld [vmem:[#allocation2] sm:$0xff]
    %v82 = vpack.c.bf16 %v81, %v81
    %v83 = vld [vmem:[#allocation5] sm:$0xff]
    %v84 = vld [vmem:[#allocation5 + $0x8] sm:$0xff]
    %v85 = vld [vmem:[#allocation5 + $0x10] sm:$0xff]
    %v86 = vld [vmem:[#allocation5 + $0x18] sm:$0xff]
    %v87 = vld [vmem:[#allocation5 + $0x20] sm:$0xff]
    %v88 = vld [vmem:[#allocation5 + $0x28] sm:$0xff]
    %v89 = vld [vmem:[#allocation5 + $0x30] sm:$0xff]
    %v90 = vld [vmem:[#allocation5 + $0x38] sm:$0xff]
    %v91 = vld [vmem:[%s2] sm:$0xf]
    %v93 = vlaneseq
    %v94 = vshrl.u32 %v93, 7
    %v95 = vsub.s32 0, %v94
    %v96 = vrot.slane %v91, %v95
    %v97 = vlaneseq
    %v98 = vshrl.u32 %v97, 7
    %v99 = vsub.s32 1, %v98
    %v100 = vrot.slane %v91, %v99
    %v101 = vlaneseq
    %v102 = vshrl.u32 %v101, 7
    %v103 = vsub.s32 2, %v102
    %v104 = vrot.slane %v91, %v103
    %v105 = vlaneseq
    %v106 = vshrl.u32 %v105, 7
    %v107 = vsub.s32 3, %v106
    %v108 = vrot.slane %v91, %v107
    %v121 = vunpack.c.l.b16 %v83
    %v122 = vunpack.c.h.b16 %v83
    %v123 = vunpack.c.l.b16 %v84
    %v124 = vunpack.c.h.b16 %v84
    %v125 = vunpack.c.l.b16 %v85
    %v126 = vunpack.c.h.b16 %v85
    %v127 = vunpack.c.l.b16 %v86
    %v128 = vunpack.c.h.b16 %v86
    %v129 = vunpack.c.l.b16 %v87
    %v130 = vunpack.c.h.b16 %v87
    %v131 = vunpack.c.l.b16 %v88
    %v132 = vunpack.c.h.b16 %v88
    %v133 = vunpack.c.l.b16 %v89
    %v134 = vunpack.c.h.b16 %v89
    %v135 = vunpack.c.l.b16 %v90
    %v136 = vunpack.c.h.b16 %v90
    %v137 = vpack.c.b16 %v125, %v121
    %v138 = vpack.c.b16 %v126, %v122
    %v139 = vpack.c.b16 %v127, %v123
    %v140 = vpack.c.b16 %v128, %v124
    %v141 = vpack.c.b16 %v133, %v129
    %v142 = vpack.c.b16 %v134, %v130
    %v143 = vpack.c.b16 %v135, %v131
    %v144 = vpack.c.b16 %v136, %v132
    %vm153 = vcmask 261120
    %v155 = vsel %vm153, %v82, 0
    %157 = vmatprep.subr.bf16.mxu0 %v138
    %158 = vmatpush1.bf16.msra.mxu0 %v137
    %159 = vmatprep.subr.bf16.mxu0 %v142
    %160 = vmatpush1.bf16.msra.mxu0 %v141
    %161 = vmatprep.subr.bf16.mxu0 0
    %162 = vmatpush1.bf16.msra.mxu0 0
    %163 = vmatprep.subr.bf16.mxu0 0
    %164 = vmatpush1.bf16.msra.mxu0 0
    %165 = vmatprep.subr.bf16.mxu0 0
    %166 = vmatpush1.bf16.msra.mxu0 0
    %167 = vmatprep.subr.bf16.mxu0 0
    %168 = vmatpush1.bf16.msra.mxu0 0
    %169 = vmatprep.subr.bf16.mxu0 0
    %170 = vmatpush1.bf16.msra.mxu0 0
    %171 = vmatprep.subr.bf16.mxu0 0
    %172 = vmatpush1.bf16.msra.mxu0 0
    %173 = vmatprep.subr.bf16.mxu0 0
    %174 = vmatpush1.bf16.msra.mxu0 0
    %175 = vmatprep.subr.bf16.mxu0 0
    %176 = vmatpush1.bf16.msra.mxu0 0
    %177 = vmatprep.subr.bf16.mxu0 0
    %178 = vmatpush1.bf16.msra.mxu0 0
    %179 = vmatprep.subr.bf16.mxu0 0
    %180 = vmatpush1.bf16.msra.mxu0 0
    %181 = vmatprep.subr.bf16.mxu0 0
    %182 = vmatpush1.bf16.msra.mxu0 0
    %183 = vmatprep.subr.bf16.mxu0 0
    %184 = vmatpush1.bf16.msra.mxu0 0
    %185 = vmatprep.subr.bf16.mxu0 0
    %186 = vmatpush1.bf16.msra.mxu0 0
    %187 = vmatprep.subr.bf16.mxu0 0
    %188 = vmatpush1.bf16.msra.mxu0 0
    %189 = vmatprep.mubr.bf16.mxu0 0
    %190 = vmatmul.mubr.bf16.gmra.mrb[0].mxu0 %v155
    %v191 = vpop.f32.mrb[0].mxu0
    %v192 = vadd.f32 %v96, %v191
    %v193 = vpop.f32.mrb[0].mxu0
    %v194 = vadd.f32 %v100, %v193
    %v195 = vpop.f32.mrb[0].mxu0
    %v196 = vpop.f32.mrb[0].mxu0
    %197 = vdwg.mxu0
    %198 = vmatprep.subr.bf16.mxu0 %v140
    %199 = vmatpush1.bf16.msra.mxu0 %v139
    %200 = vmatprep.subr.bf16.mxu0 %v144
    %201 = vmatpush1.bf16.msra.mxu0 %v143
    %202 = vmatprep.subr.bf16.mxu0 0
    %203 = vmatpush1.bf16.msra.mxu0 0
    %204 = vmatprep.subr.bf16.mxu0 0
    %205 = vmatpush1.bf16.msra.mxu0 0
    %206 = vmatprep.subr.bf16.mxu0 0
    %207 = vmatpush1.bf16.msra.mxu0 0
    %208 = vmatprep.subr.bf16.mxu0 0
    %209 = vmatpush1.bf16.msra.mxu0 0
    %210 = vmatprep.subr.bf16.mxu0 0
    %211 = vmatpush1.bf16.msra.mxu0 0
    %212 = vmatprep.subr.bf16.mxu0 0
    %213 = vmatpush1.bf16.msra.mxu0 0
    %214 = vmatprep.subr.bf16.mxu0 0
    %215 = vmatpush1.bf16.msra.mxu0 0
    %216 = vmatprep.subr.bf16.mxu0 0
    %217 = vmatpush1.bf16.msra.mxu0 0
    %218 = vmatprep.subr.bf16.mxu0 0
    %219 = vmatpush1.bf16.msra.mxu0 0
    %220 = vmatprep.subr.bf16.mxu0 0
    %221 = vmatpush1.bf16.msra.mxu0 0
    %222 = vmatprep.subr.bf16.mxu0 0
    %223 = vmatpush1.bf16.msra.mxu0 0
    %224 = vmatprep.subr.bf16.mxu0 0
    %225 = vmatpush1.bf16.msra.mxu0 0
    %226 = vmatprep.subr.bf16.mxu0 0
    %227 = vmatpush1.bf16.msra.mxu0 0
    %228 = vmatprep.subr.bf16.mxu0 0
    %229 = vmatpush1.bf16.msra.mxu0 0
    %230 = vmatprep.mubr.bf16.mxu0 0
    %231 = vmatmul.mubr.bf16.gmra.mrb[0].mxu0 %v155
    %v232 = vpop.f32.mrb[0].mxu0
    %v233 = vadd.f32 %v104, %v232
    %v234 = vpop.f32.mrb[0].mxu0
    %v235 = vadd.f32 %v108, %v234
    %v236 = vpop.f32.mrb[0].mxu0
    %v237 = vpop.f32.mrb[0].mxu0
    %238 = vdwg.mxu0
    %v239 = vmax.f32 %v192, 0.0
    %v240 = vmax.f32 %v194, 0.0
    %v241 = vmax.f32 %v233, 0.0
    %v242 = vmax.f32 %v235, 0.0
    %v243 = vpack.c.bf16 %v239, %v239
    %v244 = vpack.c.bf16 %v240, %v240
    %v245 = vpack.c.bf16 %v241, %v241
    %v246 = vpack.c.bf16 %v242, %v242
    %v247 = vld [vmem:[#allocation7] sm:$0xf]
    %v248 = vld [vmem:[#allocation7 + $0x4] sm:$0xf]
    %v249 = vld [vmem:[#allocation7 + $0x8] sm:$0xf]
    %v250 = vld [vmem:[#allocation7 + $0xc] sm:$0xf]
    %v251 = vld [vmem:[#allocation7 + $0x10] sm:$0xf]
    %v252 = vld [vmem:[#allocation7 + $0x14] sm:$0xf]
    %v253 = vld [vmem:[#allocation7 + $0x18] sm:$0xf]
    %v254 = vld [vmem:[#allocation7 + $0x1c] sm:$0xf]
    %v255 = vld [vmem:[#allocation7 + $0x20] sm:$0xf]
    %v256 = vld [vmem:[#allocation7 + $0x24] sm:$0xf]
    %v257 = vld [vmem:[#allocation7 + $0x28] sm:$0xf]
    %v258 = vld [vmem:[#allocation7 + $0x2c] sm:$0xf]
    %v259 = vld [vmem:[#allocation7 + $0x30] sm:$0xf]
    %v260 = vld [vmem:[#allocation7 + $0x34] sm:$0xf]
    %v261 = vld [vmem:[#allocation7 + $0x38] sm:$0xf]
    %v262 = vld [vmem:[#allocation7 + $0x3c] sm:$0xf]
    %v263 = vld [vmem:[#allocation7 + $0x40] sm:$0xf]
    %v264 = vld [vmem:[#allocation7 + $0x44] sm:$0xf]
    %v265 = vld [vmem:[#allocation7 + $0x48] sm:$0xf]
    %v266 = vld [vmem:[#allocation7 + $0x4c] sm:$0xf]
    %v267 = vld [vmem:[#allocation7 + $0x50] sm:$0xf]
    %v268 = vld [vmem:[#allocation7 + $0x54] sm:$0xf]
    %v269 = vld [vmem:[#allocation7 + $0x58] sm:$0xf]
    %v270 = vld [vmem:[#allocation7 + $0x5c] sm:$0xf]
    %v271 = vld [vmem:[#allocation7 + $0x60] sm:$0xf]
    %v272 = vld [vmem:[#allocation7 + $0x64] sm:$0xf]
    %v273 = vld [vmem:[#allocation7 + $0x68] sm:$0xf]
    %v274 = vld [vmem:[#allocation7 + $0x6c] sm:$0xf]
    %v275 = vld [vmem:[#allocation7 + $0x70] sm:$0xf]
    %v276 = vld [vmem:[#allocation7 + $0x74] sm:$0xf]
    %v277 = vld [vmem:[#allocation7 + $0x78] sm:$0xf]
    %v278 = vld [vmem:[#allocation7 + $0x7c] sm:$0xf]
    %v279 = vld [vmem:[#allocation7 + $0x80] sm:$0xf]
    %v280 = vld [vmem:[#allocation7 + $0x84] sm:$0xf]
    %v281 = vld [vmem:[#allocation7 + $0x88] sm:$0xf]
    %v282 = vld [vmem:[#allocation7 + $0x8c] sm:$0xf]
    %v283 = vld [vmem:[#allocation7 + $0x90] sm:$0xf]
    %v284 = vld [vmem:[#allocation7 + $0x94] sm:$0xf]
    %v285 = vld [vmem:[#allocation7 + $0x98] sm:$0xf]
    %v286 = vld [vmem:[#allocation7 + $0x9c] sm:$0xf]
    %v287 = vld [vmem:[#allocation7 + $0xa0] sm:$0xf]
    %v288 = vld [vmem:[#allocation7 + $0xa4] sm:$0xf]
    %v289 = vld [vmem:[#allocation7 + $0xa8] sm:$0xf]
    %v290 = vld [vmem:[#allocation7 + $0xac] sm:$0xf]
    %v291 = vld [vmem:[#allocation7 + $0xb0] sm:$0xf]
    %v292 = vld [vmem:[#allocation7 + $0xb4] sm:$0xf]
    %v293 = vld [vmem:[#allocation7 + $0xb8] sm:$0xf]
    %v294 = vld [vmem:[#allocation7 + $0xbc] sm:$0xf]
    %v295 = vld [vmem:[#allocation7 + $0xc0] sm:$0xf]
    %v296 = vld [vmem:[#allocation7 + $0xc4] sm:$0xf]
    %v297 = vld [vmem:[#allocation7 + $0xc8] sm:$0xf]
    %v298 = vld [vmem:[#allocation7 + $0xcc] sm:$0xf]
    %v299 = vld [vmem:[#allocation7 + $0xd0] sm:$0xf]
    %v300 = vld [vmem:[#allocation7 + $0xd4] sm:$0xf]
    %v301 = vld [vmem:[#allocation7 + $0xd8] sm:$0xf]
    %v302 = vld [vmem:[#allocation7 + $0xdc] sm:$0xf]
    %v303 = vld [vmem:[#allocation7 + $0xe0] sm:$0xf]
    %v304 = vld [vmem:[#allocation7 + $0xe4] sm:$0xf]
    %v305 = vld [vmem:[#allocation7 + $0xe8] sm:$0xf]
    %v306 = vld [vmem:[#allocation7 + $0xec] sm:$0xf]
    %v307 = vld [vmem:[#allocation7 + $0xf0] sm:$0xf]
    %v308 = vld [vmem:[#allocation7 + $0xf4] sm:$0xf]
    %v309 = vld [vmem:[#allocation7 + $0xf8] sm:$0xf]
    %v310 = vld [vmem:[#allocation7 + $0xfc] sm:$0xf]
    %v311 = vld [vmem:[%s4] sm:$0x1]
    %v313 = vlaneseq
    %v314 = vshrl.u32 %v313, 7
    %v315 = vsub.s32 0, %v314
    %v316 = vrot.slane %v311, %v315
    %v382 = vunpack.c.l.b16 %v247
    %v383 = vunpack.c.l.b16 %v248
    %v384 = vunpack.c.l.b16 %v249
    %v385 = vunpack.c.l.b16 %v250
    %v386 = vunpack.c.l.b16 %v251
    %v387 = vunpack.c.l.b16 %v252
    %v388 = vunpack.c.l.b16 %v253
    %v389 = vunpack.c.l.b16 %v254
    %v390 = vunpack.c.l.b16 %v255
    %v391 = vunpack.c.l.b16 %v256
    %v392 = vunpack.c.l.b16 %v257
    %v393 = vunpack.c.l.b16 %v258
    %v394 = vunpack.c.l.b16 %v259
    %v395 = vunpack.c.l.b16 %v260
    %v396 = vunpack.c.l.b16 %v261
    %v397 = vunpack.c.l.b16 %v262
    %v398 = vunpack.c.l.b16 %v263
    %v399 = vunpack.c.l.b16 %v264
    %v400 = vunpack.c.l.b16 %v265
    %v401 = vunpack.c.l.b16 %v266
    %v402 = vunpack.c.l.b16 %v267
    %v403 = vunpack.c.l.b16 %v268
    %v404 = vunpack.c.l.b16 %v269
    %v405 = vunpack.c.l.b16 %v270
    %v406 = vunpack.c.l.b16 %v271
    %v407 = vunpack.c.l.b16 %v272
    %v408 = vunpack.c.l.b16 %v273
    %v409 = vunpack.c.l.b16 %v274
    %v410 = vunpack.c.l.b16 %v275
    %v411 = vunpack.c.l.b16 %v276
    %v412 = vunpack.c.l.b16 %v277
    %v413 = vunpack.c.l.b16 %v278
    %v414 = vunpack.c.l.b16 %v279
    %v415 = vunpack.c.l.b16 %v280
    %v416 = vunpack.c.l.b16 %v281
    %v417 = vunpack.c.l.b16 %v282
    %v418 = vunpack.c.l.b16 %v283
    %v419 = vunpack.c.l.b16 %v284
    %v420 = vunpack.c.l.b16 %v285
    %v421 = vunpack.c.l.b16 %v286
    %v422 = vunpack.c.l.b16 %v287
    %v423 = vunpack.c.l.b16 %v288
    %v424 = vunpack.c.l.b16 %v289
    %v425 = vunpack.c.l.b16 %v290
    %v426 = vunpack.c.l.b16 %v291
    %v427 = vunpack.c.l.b16 %v292
    %v428 = vunpack.c.l.b16 %v293
    %v429 = vunpack.c.l.b16 %v294
    %v430 = vunpack.c.l.b16 %v295
    %v431 = vunpack.c.l.b16 %v296
    %v432 = vunpack.c.l.b16 %v297
    %v433 = vunpack.c.l.b16 %v298
    %v434 = vunpack.c.l.b16 %v299
    %v435 = vunpack.c.l.b16 %v300
    %v436 = vunpack.c.l.b16 %v301
    %v437 = vunpack.c.l.b16 %v302
    %v438 = vunpack.c.l.b16 %v303
    %v439 = vunpack.c.l.b16 %v304
    %v440 = vunpack.c.l.b16 %v305
    %v441 = vunpack.c.l.b16 %v306
    %v442 = vunpack.c.l.b16 %v307
    %v443 = vunpack.c.l.b16 %v308
    %v444 = vunpack.c.l.b16 %v309
    %v445 = vunpack.c.l.b16 %v310
    %v446 = vpack.c.b16 %v383, %v382
    %v447 = vpack.c.b16 %v385, %v384
    %v448 = vpack.c.b16 %v387, %v386
    %v449 = vpack.c.b16 %v389, %v388
    %v450 = vpack.c.b16 %v391, %v390
    %v451 = vpack.c.b16 %v393, %v392
    %v452 = vpack.c.b16 %v395, %v394
    %v453 = vpack.c.b16 %v397, %v396
    %v454 = vpack.c.b16 %v399, %v398
    %v455 = vpack.c.b16 %v401, %v400
    %v456 = vpack.c.b16 %v403, %v402
    %v457 = vpack.c.b16 %v405, %v404
    %v458 = vpack.c.b16 %v407, %v406
    %v459 = vpack.c.b16 %v409, %v408
    %v460 = vpack.c.b16 %v411, %v410
    %v461 = vpack.c.b16 %v413, %v412
    %v462 = vpack.c.b16 %v415, %v414
    %v463 = vpack.c.b16 %v417, %v416
    %v464 = vpack.c.b16 %v419, %v418
    %v465 = vpack.c.b16 %v421, %v420
    %v466 = vpack.c.b16 %v423, %v422
    %v467 = vpack.c.b16 %v425, %v424
    %v468 = vpack.c.b16 %v427, %v426
    %v469 = vpack.c.b16 %v429, %v428
    %v470 = vpack.c.b16 %v431, %v430
    %v471 = vpack.c.b16 %v433, %v432
    %v472 = vpack.c.b16 %v435, %v434
    %v473 = vpack.c.b16 %v437, %v436
    %v474 = vpack.c.b16 %v439, %v438
    %v475 = vpack.c.b16 %v441, %v440
    %v476 = vpack.c.b16 %v443, %v442
    %v477 = vpack.c.b16 %v445, %v444
    %510 = vmatprep.subr.bf16.mxu0 0
    %511 = vmatpush1.bf16.msra.mxu0 %v446
    %512 = vmatprep.subr.bf16.mxu0 0
    %513 = vmatpush1.bf16.msra.mxu0 %v447
    %514 = vmatprep.subr.bf16.mxu0 0
    %515 = vmatpush1.bf16.msra.mxu0 %v448
    %516 = vmatprep.subr.bf16.mxu0 0
    %517 = vmatpush1.bf16.msra.mxu0 %v449
    %518 = vmatprep.subr.bf16.mxu0 0
    %519 = vmatpush1.bf16.msra.mxu0 %v450
    %520 = vmatprep.subr.bf16.mxu0 0
    %521 = vmatpush1.bf16.msra.mxu0 %v451
    %522 = vmatprep.subr.bf16.mxu0 0
    %523 = vmatpush1.bf16.msra.mxu0 %v452
    %524 = vmatprep.subr.bf16.mxu0 0
    %525 = vmatpush1.bf16.msra.mxu0 %v453
    %526 = vmatprep.subr.bf16.mxu0 0
    %527 = vmatpush1.bf16.msra.mxu0 %v454
    %528 = vmatprep.subr.bf16.mxu0 0
    %529 = vmatpush1.bf16.msra.mxu0 %v455
    %530 = vmatprep.subr.bf16.mxu0 0
    %531 = vmatpush1.bf16.msra.mxu0 %v456
    %532 = vmatprep.subr.bf16.mxu0 0
    %533 = vmatpush1.bf16.msra.mxu0 %v457
    %534 = vmatprep.subr.bf16.mxu0 0
    %535 = vmatpush1.bf16.msra.mxu0 %v458
    %536 = vmatprep.subr.bf16.mxu0 0
    %537 = vmatpush1.bf16.msra.mxu0 %v459
    %538 = vmatprep.subr.bf16.mxu0 0
    %539 = vmatpush1.bf16.msra.mxu0 %v460
    %540 = vmatprep.subr.bf16.mxu0 0
    %541 = vmatpush1.bf16.msra.mxu0 %v461
    %542 = vmatprep.mubr.bf16.mxu0 %v244
    %543 = vmatmul.mubr.bf16.gmra.mrb[0].mxu0 %v243
    %v544 = vpop.f32.mrb[0].mxu0
    %v545 = vadd.f32 %v316, %v544
    %v546 = vpop.f32.mrb[0].mxu0
    %v547 = vpop.f32.mrb[0].mxu0
    %v548 = vpop.f32.mrb[0].mxu0
    %549 = vdwg.mxu0
    %550 = vmatprep.subr.bf16.mxu0 0
    %551 = vmatpush1.bf16.msra.mxu0 %v462
    %552 = vmatprep.subr.bf16.mxu0 0
    %553 = vmatpush1.bf16.msra.mxu0 %v463
    %554 = vmatprep.subr.bf16.mxu0 0
    %555 = vmatpush1.bf16.msra.mxu0 %v464
    %556 = vmatprep.subr.bf16.mxu0 0
    %557 = vmatpush1.bf16.msra.mxu0 %v465
    %558 = vmatprep.subr.bf16.mxu0 0
    %559 = vmatpush1.bf16.msra.mxu0 %v466
    %560 = vmatprep.subr.bf16.mxu0 0
    %561 = vmatpush1.bf16.msra.mxu0 %v467
    %562 = vmatprep.subr.bf16.mxu0 0
    %563 = vmatpush1.bf16.msra.mxu0 %v468
    %564 = vmatprep.subr.bf16.mxu0 0
    %565 = vmatpush1.bf16.msra.mxu0 %v469
    %566 = vmatprep.subr.bf16.mxu0 0
    %567 = vmatpush1.bf16.msra.mxu0 %v470
    %568 = vmatprep.subr.bf16.mxu0 0
    %569 = vmatpush1.bf16.msra.mxu0 %v471
    %570 = vmatprep.subr.bf16.mxu0 0
    %571 = vmatpush1.bf16.msra.mxu0 %v472
    %572 = vmatprep.subr.bf16.mxu0 0
    %573 = vmatpush1.bf16.msra.mxu0 %v473
    %574 = vmatprep.subr.bf16.mxu0 0
    %575 = vmatpush1.bf16.msra.mxu0 %v474
    %576 = vmatprep.subr.bf16.mxu0 0
    %577 = vmatpush1.bf16.msra.mxu0 %v475
    %578 = vmatprep.subr.bf16.mxu0 0
    %579 = vmatpush1.bf16.msra.mxu0 %v476
    %580 = vmatprep.subr.bf16.mxu0 0
    %581 = vmatpush1.bf16.msra.mxu0 %v477
    %582 = vmatprep.mubr.bf16.mxu0 %v246
    %583 = vmatmul.mubr.bf16.gmra.mrb[0].mxu0 %v245
    %v584 = vpop.f32.mrb[0].mxu0
    %v585 = vadd.f32 %v545, %v584
    %v586 = vpop.f32.mrb[0].mxu0
    %v587 = vpop.f32.mrb[0].mxu0
    %v588 = vpop.f32.mrb[0].mxu0
    %589 = vdwg.mxu0
    %v590 = vmax.f32 %v585, 0.0
    %v591 = vpack.c.bf16 %v590, %v590
    %v592 = vld [vmem:[#allocation8] sm:$0xf]
    %v593 = vld [vmem:[#allocation8 + $0x4] sm:$0xf]
    %v594 = vld [vmem:[#allocation8 + $0x8] sm:$0xf]
    %v595 = vld [vmem:[#allocation8 + $0xc] sm:$0xf]
    %v596 = vld [vmem:[#allocation8 + $0x10] sm:$0xf]
    %v597 = vld [vmem:[#allocation8 + $0x14] sm:$0xf]
    %v598 = vld [vmem:[#allocation8 + $0x18] sm:$0xf]
    %v599 = vld [vmem:[#allocation8 + $0x1c] sm:$0xf]
    %v600 = vld [vmem:[#allocation8 + $0x20] sm:$0xf]
    %v601 = vld [vmem:[#allocation8 + $0x24] sm:$0xf]
    %v602 = vld [vmem:[#allocation8 + $0x28] sm:$0xf]
    %v603 = vld [vmem:[#allocation8 + $0x2c] sm:$0xf]
    %v604 = vld [vmem:[#allocation8 + $0x30] sm:$0xf]
    %v605 = vld [vmem:[#allocation8 + $0x34] sm:$0xf]
    %v606 = vld [vmem:[#allocation8 + $0x38] sm:$0xf]
    %v607 = vld [vmem:[#allocation8 + $0x3c] sm:$0xf]
    %v608 = vld [vmem:[%s6] sm:$0x1]
    %v610 = vlaneseq
    %v611 = vshrl.u32 %v610, 7
    %v612 = vsub.s32 0, %v611
    %v613 = vrot.slane %v608, %v612
    %v631 = vunpack.c.l.b16 %v592
    %v632 = vunpack.c.l.b16 %v593
    %v633 = vunpack.c.l.b16 %v594
    %v634 = vunpack.c.l.b16 %v595
    %v635 = vunpack.c.l.b16 %v596
    %v636 = vunpack.c.l.b16 %v597
    %v637 = vunpack.c.l.b16 %v598
    %v638 = vunpack.c.l.b16 %v599
    %v639 = vunpack.c.l.b16 %v600
    %v640 = vunpack.c.l.b16 %v601
    %v641 = vunpack.c.l.b16 %v602
    %v642 = vunpack.c.l.b16 %v603
    %v643 = vunpack.c.l.b16 %v604
    %v644 = vunpack.c.l.b16 %v605
    %v645 = vunpack.c.l.b16 %v606
    %v646 = vunpack.c.l.b16 %v607
    %v647 = vpack.c.b16 %v632, %v631
    %v648 = vpack.c.b16 %v634, %v633
    %v649 = vpack.c.b16 %v636, %v635
    %v650 = vpack.c.b16 %v638, %v637
    %v651 = vpack.c.b16 %v640, %v639
    %v652 = vpack.c.b16 %v642, %v641
    %v653 = vpack.c.b16 %v644, %v643
    %v654 = vpack.c.b16 %v646, %v645
    %663 = vmatprep.subr.bf16.mxu0 0
    %664 = vmatpush1.bf16.msra.mxu0 %v647
    %665 = vmatprep.subr.bf16.mxu0 0
    %666 = vmatpush1.bf16.msra.mxu0 %v648
    %667 = vmatprep.subr.bf16.mxu0 0
    %668 = vmatpush1.bf16.msra.mxu0 %v649
    %669 = vmatprep.subr.bf16.mxu0 0
    %670 = vmatpush1.bf16.msra.mxu0 %v650
    %671 = vmatprep.subr.bf16.mxu0 0
    %672 = vmatpush1.bf16.msra.mxu0 %v651
    %673 = vmatprep.subr.bf16.mxu0 0
    %674 = vmatpush1.bf16.msra.mxu0 %v652
    %675 = vmatprep.subr.bf16.mxu0 0
    %676 = vmatpush1.bf16.msra.mxu0 %v653
    %677 = vmatprep.subr.bf16.mxu0 0
    %678 = vmatpush1.bf16.msra.mxu0 %v654
    %679 = vmatprep.subr.bf16.mxu0 0
    %680 = vmatpush1.bf16.msra.mxu0 0
    %681 = vmatprep.subr.bf16.mxu0 0
    %682 = vmatpush1.bf16.msra.mxu0 0
    %683 = vmatprep.subr.bf16.mxu0 0
    %684 = vmatpush1.bf16.msra.mxu0 0
    %685 = vmatprep.subr.bf16.mxu0 0
    %686 = vmatpush1.bf16.msra.mxu0 0
    %687 = vmatprep.subr.bf16.mxu0 0
    %688 = vmatpush1.bf16.msra.mxu0 0
    %689 = vmatprep.subr.bf16.mxu0 0
    %690 = vmatpush1.bf16.msra.mxu0 0
    %691 = vmatprep.subr.bf16.mxu0 0
    %692 = vmatpush1.bf16.msra.mxu0 0
    %693 = vmatprep.subr.bf16.mxu0 0
    %694 = vmatpush1.bf16.msra.mxu0 0
    %695 = vmatprep.mubr.bf16.mxu0 0
    %696 = vmatmul.mubr.bf16.gmra.mrb[0].mxu0 %v591
    %v697 = vpop.f32.mrb[0].mxu0
    %v698 = vadd.f32 %v613, %v697
    %v699 = vpop.f32.mrb[0].mxu0
    %v700 = vpop.f32.mrb[0].mxu0
    %v701 = vpop.f32.mrb[0].mxu0
    %702 = vdwg.mxu0
    %v703 = vtanh.pop %v698
    %v704 = vpack.c.bf16 %v703, %v703
    %705 = vst [vmem:[#allocation10] sm:$0xf] %v704
    // Predicated region
    $region46: #{tpu_custom_call.1} parent=1 // pred_check
      _
    $region47: #{tpu_custom_call.1} parent=1 // pred_check_branch
      %707 = sbr.rel (0) target = $region49
    $region48: #{tpu_custom_call.1} parent=1 // pred_region
      %s709 = ssub.s32 64, 64
      %710 = vsyncadd [#allocation4], %s709
      %s712 = sshll.u32 [#allocation10], 4
      %s713 = int_to_ptr.vmem [resolvable:$true] %s712
      %715 = dma.vmem_to_hbm [thread:$0]  %s713, 64, %s7, [#allocation4]
    $region49: #{tpu_custom_call.1} parent=1 // pred_fallthru
      _
    // Predicated region
    $region50: #{tpu_custom_call.1} parent=1 // pred_check
      _
    $region51: #{tpu_custom_call.1} parent=1 // pred_check_branch
      %717 = sbr.rel (0) target = $region53
    $region52: #{tpu_custom_call.1} parent=1 // pred_region
      %718 = dma.done [#allocation4], 64
    $region53: #{tpu_custom_call.1} parent=1 // pred_fallthru
      _
    %719 = vsyncpa [#allocation3], 1
    %720 = vsyncpa [#allocation6], 1
    %721 = vsyncpa [#allocation9], 1
    %722 = vsyncpa [#allocation4], 1

</llo_original>
